<compile_context>
chip_gen: v6e
topology: v6e:2x2x1
jax: 0.10.0
libtpu: 0.0.40
codegen_flags: <defaults>
</compile_context>

<pallas_src>
import math

import jax
import jax.numpy as jnp
from jax.experimental import pallas as pl
from jax.experimental.pallas import tpu as pltpu


def value_net_kernel(x_ref, w1_ref, b1_ref, w2_ref, b2_ref, w3_ref, b3_ref,
                     o_ref):
    """One batch tile: two ReLU'd linears (MXU) + VPU/XLU value head."""
    # In-kernel cast of the f32 input tile to bf16 for the MXU.
    x_bf = x_ref[...].astype(jnp.bfloat16)

    # Layer 1: bf16 x bf16 -> f32 accumulate on the MXU.
    h1 = jnp.dot(x_bf, w1_ref[...], preferred_element_type=jnp.float32)
    h1 = jnp.maximum(h1 + b1_ref[...], 0.0)              # F.relu(linears[0](x))

    # Layer 2: cast activations to bf16 to stay on the fast MXU path.
    h2 = jnp.dot(h1.astype(w2_ref.dtype), w2_ref[...],
                 preferred_element_type=jnp.float32)
    h2 = jnp.maximum(h2 + b2_ref[...], 0.0)              # F.relu(linears[1](x))

    # Final 64 -> 1 head: broadcast multiply (VALU) + lane reduce (XLU)
    # instead of an N=1 MXU matmul.  w3_ref is (1, 64) f32.
    out = jnp.sum(h2 * w3_ref[...], axis=-1, keepdims=True)
    o_ref[...] = (out + b3_ref[...]).astype(o_ref.dtype)  # linears[-1](x)


def _round_up(v, m):
    return ((v + m - 1) // m) * m


def _pick_batch_tile(B, state_dim, hidden=64, tb_max=4096,
                     vmem_budget_bytes=24 * 1024 * 1024):
    """Pick a large batch tile.

    * B <= 16: single full-array block (block dims equal array dims, so the
      (8,128) tiling constraint doesn't bind, and there is nothing to split).
    * B  > 16: aim for >=2 grid steps (so "parallel" can shard across both
      TensorCores on v7x) while keeping tiles as big as possible to amortize
      the ~0.35 us per-grid-step overhead.  Shrink only if the conservative
      VMEM estimate (incl. h1/h2 f32 temporaries) exceeds the budget, which
      is chosen to fit v7x's 32 MiB scoped default.
    """
    if B <= 16:
        return B

    tb = min(tb_max, _round_up(pl.cdiv(B, 2), 16))
    tb = max(tb, 16)

    def est(t):
        x_bytes = 2 * t * state_dim * 4            # double-buffered f32 input
        out_bytes = 2 * t * 1 * 4                  # double-buffered f32 output
        act_bytes = 3 * t * hidden * 4             # h1/h2 f32 temps + bf16 copy
        w_bytes = (state_dim * hidden + hidden * hidden) * 2 \
            + 4 * hidden * 4                       # resident weights + biases
        return x_bytes + out_bytes + act_bytes + w_bytes

    while tb > 16 and est(tb) > vmem_budget_bytes:
        tb //= 2
    return tb


def value_network_forward(x, params):
    """x: (B, state_dim) f32.  params: (w1, b1, w2, b2, w3, b3), weights (in, out)."""
    w1, b1, w2, b2, w3, b3 = params
    B, state_dim = x.shape
    hidden = w1.shape[1]

    # Tiny weight casts stay in the wrapper; x is cast inside the kernel.
    w1_bf = w1.astype(jnp.bfloat16)
    w2_bf = w2.astype(jnp.bfloat16)
    w3_row = w3.reshape(1, hidden).astype(jnp.float32)

    tb = _pick_batch_tile(B, state_dim, hidden)
    grid = (pl.cdiv(B, tb),)           # ragged last tile: OOB reads harmless,
                                       # OOB writes dropped (rows independent)
    resident = lambda a: pl.BlockSpec(a.shape, lambda i: (0, 0))

    out = pl.pallas_call(
        value_net_kernel,
        out_shape=jax.ShapeDtypeStruct((B, 1), jnp.float32),
        grid=grid,
        in_specs=[
            pl.BlockSpec((tb, state_dim), lambda i: (i, 0)),   # x tile (f32)
            resident(w1_bf), resident(b1),
            resident(w2_bf), resident(b2),
            resident(w3_row), resident(b3),
        ],
        out_specs=pl.BlockSpec((tb, 1), lambda i: (i, 0)),
        compiler_params=pltpu.CompilerParams(
            dimension_semantics=("parallel",),
        ),
    )(x, w1_bf, b1, w2_bf, b2, w3_row, b3)

    return out


def init_value_network_params(key, state_dim, hidden_layer_sizes=(64, 64),
                              init_w=0.003):
    """Init mirroring the PyTorch module; weights already transposed to (in, out)."""
    sizes = [state_dim] + list(hidden_layer_sizes)
    params = []
    for i in range(len(hidden_layer_sizes)):
        key, kw, kb = jax.random.split(key, 3)
        fan_in, fan_out = sizes[i], sizes[i + 1]
        bound = 1.0 / math.sqrt(fan_in)
        w = jax.random.uniform(kw, (fan_in, fan_out), jnp.float32,
                               -bound, bound)
        b = jax.random.uniform(kb, (1, fan_out), jnp.float32, -bound, bound)
        params += [w, b]
    key, kw, kb = jax.random.split(key, 3)
    w = jax.random.uniform(kw, (sizes[-1], 1), jnp.float32, -init_w, init_w)
    b = jax.random.uniform(kb, (1, 1), jnp.float32, -init_w, init_w)
    params += [w, b]
    return tuple(params)


if __name__ == "__main__":
    key = jax.random.PRNGKey(0)
    k_x, k_p = jax.random.split(key)

    batch, state_dim = 8, 32
    x = jax.random.normal(k_x, (batch, state_dim), jnp.float32)
    params = init_value_network_params(k_p, state_dim,
                                       hidden_layer_sizes=(64, 64),
                                       init_w=0.003)

    out = value_network_forward(x, params)
    out = jax.block_until_ready(out)
    assert out.shape == (batch, 1)

    w1, b1, w2, b2, w3, b3 = params

    # Reference 1: same bf16 casting points as the kernel (kernel correctness).
    x_bf = x.astype(jnp.bfloat16)
    ref = jnp.maximum(
        jnp.dot(x_bf, w1.astype(jnp.bfloat16),
                preferred_element_type=jnp.float32) + b1, 0.0)
    ref = jnp.maximum(
        jnp.dot(ref.astype(jnp.bfloat16), w2.astype(jnp.bfloat16),
                preferred_element_type=jnp.float32) + b2, 0.0)
    ref = jnp.sum(ref * w3.reshape(1, -1), axis=-1, keepdims=True) + b3
    assert jnp.allclose(out, ref, atol=1e-4, rtol=1e-4)

    # Reference 2: full f32 math (module semantics; loose tol for bf16 streams).
    ref32 = jnp.maximum(x @ w1 + b1, 0.0)
    ref32 = jnp.maximum(ref32 @ w2 + b2, 0.0)
    ref32 = ref32 @ w3 + b3
    assert jnp.allclose(out, ref32, atol=2e-2, rtol=2e-2)

    # Exercise a larger, ragged batch (no jnp.pad / out[:B] path) as well.
    k_x2, _ = jax.random.split(k_x)
    x_big = jax.random.normal(k_x2, (1000, state_dim), jnp.float32)
    out_big = jax.block_until_ready(value_network_forward(x_big, params))
    ref_big = jnp.maximum(x_big @ w1 + b1, 0.0)
    ref_big = jnp.maximum(ref_big @ w2 + b2, 0.0)
    ref_big = ref_big @ w3 + b3
    assert out_big.shape == (1000, 1)
    assert jnp.allclose(out_big, ref_big, atol=2e-2, rtol=2e-2)

    print("KERNEL_OK")
</pallas_src>

<mosaic_0001>
module attributes {stable_mosaic.version = 11 : i64} {
  func.func @value_net_kernel(%arg0: i32, %arg1: memref<8x32xf32, #tpu.memory_space<vmem>>, %arg2: memref<32x64xbf16, #tpu.memory_space<vmem>>, %arg3: memref<1x64xf32, #tpu.memory_space<vmem>>, %arg4: memref<64x64xbf16, #tpu.memory_space<vmem>>, %arg5: memref<1x64xf32, #tpu.memory_space<vmem>>, %arg6: memref<1x64xf32, #tpu.memory_space<vmem>>, %arg7: memref<1x1xf32, #tpu.memory_space<vmem>>, %arg8: memref<8x1xf32, #tpu.memory_space<vmem>>) attributes {dimension_semantics = [#tpu.dimension_semantics<parallel>], iteration_bounds = array<i64: 1>, scalar_prefetch = 0 : i64, scratch_operands = 0 : i64, tpu.core_type = #tpu.core_type<tc>, window_params = [{transform_indices = @transform_0, window_bounds = array<i64: 8, 32>}, {pipeline_mode = #tpu.pipeline_mode<synchronous>, transform_indices = @transform_1, window_bounds = array<i64: 32, 64>}, {pipeline_mode = #tpu.pipeline_mode<synchronous>, transform_indices = @transform_2, window_bounds = array<i64: 1, 64>}, {pipeline_mode = #tpu.pipeline_mode<synchronous>, transform_indices = @transform_3, window_bounds = array<i64: 64, 64>}, {pipeline_mode = #tpu.pipeline_mode<synchronous>, transform_indices = @transform_4, window_bounds = array<i64: 1, 64>}, {pipeline_mode = #tpu.pipeline_mode<synchronous>, transform_indices = @transform_5, window_bounds = array<i64: 1, 64>}, {pipeline_mode = #tpu.pipeline_mode<synchronous>, transform_indices = @transform_6, window_bounds = array<i64: 1, 1>}, {transform_indices = @transform_7, window_bounds = array<i64: 8, 1>}]} {
    %c0 = arith.constant 0 : index
    %c0_0 = arith.constant 0 : index
    %0 = vector.load %arg1[%c0, %c0_0] : memref<8x32xf32, #tpu.memory_space<vmem>>, vector<8x32xf32>
    %1 = arith.truncf %0 : vector<8x32xf32> to vector<8x32xbf16>
    %c0_1 = arith.constant 0 : index
    %c0_2 = arith.constant 0 : index
    %2 = vector.load %arg2[%c0_1, %c0_2] : memref<32x64xbf16, #tpu.memory_space<vmem>>, vector<32x64xbf16>
    %cst = arith.constant dense<0.000000e+00> : vector<8x64xf32>
    %3 = tpu.matmul %1, %2, %cst {dimension_numbers = #tpu.dot_dimension_numbers<[1], [0], [0], [1], [0, 0, 1, 1], [], []>} : vector<8x32xbf16>, vector<32x64xbf16>, vector<8x64xf32> -> vector<8x64xf32>
    %c0_3 = arith.constant 0 : index
    %c0_4 = arith.constant 0 : index
    %4 = vector.load %arg3[%c0_3, %c0_4] : memref<1x64xf32, #tpu.memory_space<vmem>>, vector<1x64xf32>
    %5 = vector.broadcast %4 : vector<1x64xf32> to vector<8x64xf32>
    %6 = arith.addf %3, %5 : vector<8x64xf32>
    %cst_5 = arith.constant 0.000000e+00 : f32
    %7 = vector.broadcast %cst_5 : f32 to vector<8x64xf32>
    %8 = arith.maximumf %6, %7 : vector<8x64xf32>
    %9 = arith.truncf %8 : vector<8x64xf32> to vector<8x64xbf16>
    %c0_6 = arith.constant 0 : index
    %c0_7 = arith.constant 0 : index
    %10 = vector.load %arg4[%c0_6, %c0_7] : memref<64x64xbf16, #tpu.memory_space<vmem>>, vector<64x64xbf16>
    %cst_8 = arith.constant dense<0.000000e+00> : vector<8x64xf32>
    %11 = tpu.matmul %9, %10, %cst_8 {dimension_numbers = #tpu.dot_dimension_numbers<[1], [0], [0], [1], [0, 0, 1, 1], [], []>} : vector<8x64xbf16>, vector<64x64xbf16>, vector<8x64xf32> -> vector<8x64xf32>
    %c0_9 = arith.constant 0 : index
    %c0_10 = arith.constant 0 : index
    %12 = vector.load %arg5[%c0_9, %c0_10] : memref<1x64xf32, #tpu.memory_space<vmem>>, vector<1x64xf32>
    %13 = vector.broadcast %12 : vector<1x64xf32> to vector<8x64xf32>
    %14 = arith.addf %11, %13 : vector<8x64xf32>
    %cst_11 = arith.constant 0.000000e+00 : f32
    %15 = vector.broadcast %cst_11 : f32 to vector<8x64xf32>
    %16 = arith.maximumf %14, %15 : vector<8x64xf32>
    %c0_12 = arith.constant 0 : index
    %c0_13 = arith.constant 0 : index
    %17 = vector.load %arg6[%c0_12, %c0_13] : memref<1x64xf32, #tpu.memory_space<vmem>>, vector<1x64xf32>
    %18 = vector.broadcast %17 : vector<1x64xf32> to vector<8x64xf32>
    %19 = arith.mulf %16, %18 : vector<8x64xf32>
    %cst_14 = arith.constant dense<0.000000e+00> : vector<8xf32>
    %20 = vector.multi_reduction <add>, %19, %cst_14 [1] : vector<8x64xf32> to vector<8xf32>
    %21 = vector.shape_cast %20 : vector<8xf32> to vector<8x1xf32>
    %c0_15 = arith.constant 0 : index
    %c0_16 = arith.constant 0 : index
    %22 = vector.load %arg7[%c0_15, %c0_16] : memref<1x1xf32, #tpu.memory_space<vmem>>, vector<1x1xf32>
    %23 = vector.broadcast %22 : vector<1x1xf32> to vector<8x1xf32>
    %24 = arith.addf %21, %23 : vector<8x1xf32>
    %c0_17 = arith.constant 0 : index
    %c0_18 = arith.constant 0 : index
    %25 = vector.load %arg8[%c0_17, %c0_18] : memref<8x1xf32, #tpu.memory_space<vmem>>, vector<8x1xf32>
    tpu.vector_store %arg8[%c0_17, %c0_18], %24 {strides = array<i32>} : memref<8x1xf32, #tpu.memory_space<vmem>>, vector<8x1xf32>,
    return
  }
  func.func @transform_0(%arg0: i32) -> (i32, i32) {
    %c0_i32 = arith.constant 0 : i32
    %c0_i32_0 = arith.constant 0 : i32
    return %arg0, %c0_i32 : i32, i32
  }
  func.func @transform_1(%arg0: i32) -> (i32, i32) {
    %c0_i32 = arith.constant 0 : i32
    %c0_i32_0 = arith.constant 0 : i32
    %c0_i32_1 = arith.constant 0 : i32
    return %c0_i32, %c0_i32_0 : i32, i32
  }
  func.func @transform_2(%arg0: i32) -> (i32, i32) {
    %c0_i32 = arith.constant 0 : i32
    %c0_i32_0 = arith.constant 0 : i32
    %c0_i32_1 = arith.constant 0 : i32
    return %c0_i32, %c0_i32_0 : i32, i32
  }
  func.func @transform_3(%arg0: i32) -> (i32, i32) {
    %c0_i32 = arith.constant 0 : i32
    %c0_i32_0 = arith.constant 0 : i32
    %c0_i32_1 = arith.constant 0 : i32
    return %c0_i32, %c0_i32_0 : i32, i32
  }
  func.func @transform_4(%arg0: i32) -> (i32, i32) {
    %c0_i32 = arith.constant 0 : i32
    %c0_i32_0 = arith.constant 0 : i32
    %c0_i32_1 = arith.constant 0 : i32
    return %c0_i32, %c0_i32_0 : i32, i32
  }
  func.func @transform_5(%arg0: i32) -> (i32, i32) {
    %c0_i32 = arith.constant 0 : i32
    %c0_i32_0 = arith.constant 0 : i32
    %c0_i32_1 = arith.constant 0 : i32
    return %c0_i32, %c0_i32_0 : i32, i32
  }
  func.func @transform_6(%arg0: i32) -> (i32, i32) {
    %c0_i32 = arith.constant 0 : i32
    %c0_i32_0 = arith.constant 0 : i32
    %c0_i32_1 = arith.constant 0 : i32
    return %c0_i32, %c0_i32_0 : i32, i32
  }
  func.func @transform_7(%arg0: i32) -> (i32, i32) {
    %c0_i32 = arith.constant 0 : i32
    %c0_i32_0 = arith.constant 0 : i32
    return %arg0, %c0_i32 : i32, i32
  }
}

</mosaic_0001>

<llo_original>
// kernel: tpu_custom_call.1
$region0: #{tpu_custom_call.1}
  #allocation0 [shape = 'u32[]', space=smem, size = 0x4, offset = 0x4, fixed_abs, tag = 'smem constant byte address 0x4 - core index']
  #allocation1 [shape = 'u32[144,128]{1,0:T(1,128)}', space=vmem, size = 0x12000, scoped, tag = 'internal scratch']
  #allocation2 [shape = 'f32[1,1]{1,0:T(1,128)S(1)}', space=vmem, size = 0x200, scoped, tag = 'scoped memory for tpu_custom_call.1']
  %s0 = inlined_call_operand.hbm [shape: f32[8,32], index: 0, kind: input, shape index: {}]
  %s1 = inlined_call_operand.hbm [shape: bf16[32,64], index: 1, kind: input, shape index: {}]
  %s2 = inlined_call_operand.vmem [shape: f32[1,64], index: 2, kind: input, shape index: {}]
  %s3 = inlined_call_operand.hbm [shape: bf16[64,64], index: 3, kind: input, shape index: {}]
  %s4 = inlined_call_operand.vmem [shape: f32[1,64], index: 4, kind: input, shape index: {}]
  %s5 = inlined_call_operand.vmem [shape: f32[1,64], index: 5, kind: input, shape index: {}]
  %s6 = inlined_call_operand.<no memory space> [shape: f32[1,1], index: 6, kind: input, shape index: {}]
  %s7 = inlined_call_operand.vmem [shape: f32[8,1], index: 7, kind: output, shape index: {}]
  %s8 = sld [smem:[#allocation0]]
  $region50: #{tpu_custom_call.1} parent=0
    _
  %s10 = ssub.s32 1, %s8
  %s11 = scalar_select 0, %s10, %s8
  %v12 = vstv %s6
  %13 = vst [vmem:[#allocation2] sm:$0x1] %v12
  $region1: #{tpu_custom_call.1} parent=0
    #allocation3 [shape = 'u8[4096]{0}', space=vmem, size = 0x1000, scoped, tag = 'input window, operand 0, single buffered']
    #allocation4 [shape = 's32[1]{0}', space=sflag, size = 0x4, scoped, tag = 'scoped memory for tpu_custom_call.1']
    #allocation5 [shape = 'u8[8192]{0}', space=vmem, size = 0x2000, scoped, tag = 'input window, operand 1, single buffered']
    #allocation6 [shape = 's32[1]{0}', space=sflag, size = 0x4, scoped, tag = 'scoped memory for tpu_custom_call.1']
    #allocation7 [shape = 'u8[16384]{0}', space=vmem, size = 0x4000, scoped, tag = 'input window, operand 3, single buffered']
    %14 = vsyncpa [#allocation4], 0
    %15 = vsyncpa [#allocation6], 0
    // Predicated region
    $region2: #{tpu_custom_call.1} parent=1 // pred_check
      _
    $region3: #{tpu_custom_call.1} parent=1 // pred_check_branch
      %17 = sbr.rel (0) target = $region5
    $region4: #{tpu_custom_call.1} parent=1 // pred_region
      %s19 = ssub.s32 128, 128
      %20 = vsyncadd [#allocation4], %s19
      %s22 = sshll.u32 [#allocation3], 4
      %s23 = int_to_ptr.vmem [resolvable:$true] %s22
      %25 = dma.hbm_to_vmem [thread:$0]  %s0, 128, %s23, [#allocation4]
    $region5: #{tpu_custom_call.1} parent=1 // pred_fallthru
      _
    // Predicated region
    $region6: #{tpu_custom_call.1} parent=1 // pred_check
      _
    $region7: #{tpu_custom_call.1} parent=1 // pred_check_branch
      %27 = sbr.rel (0) target = $region9
    $region8: #{tpu_custom_call.1} parent=1 // pred_region
      %s29 = ssub.s32 256, 256
      %30 = vsyncadd [#allocation6], %s29
      %s31 = sshll.u32 [#allocation5], 4
      %s32 = int_to_ptr.vmem [resolvable:$true] %s31
      %37 = dma.hbm_to_vmem [thread:$0]  %s1, 256, %s32, [#allocation6], 64, 64, 4
    $region9: #{tpu_custom_call.1} parent=1 // pred_fallthru
      _
    // Predicated region
    $region10: #{tpu_custom_call.1} parent=1 // pred_check
      _
    $region11: #{tpu_custom_call.1} parent=1 // pred_check_branch
      %39 = sbr.rel (0) target = $region13
    $region12: #{tpu_custom_call.1} parent=1 // pred_region
      _
    $region13: #{tpu_custom_call.1} parent=1 // pred_fallthru
      _
    // Predicated region
    $region14: #{tpu_custom_call.1} parent=1 // pred_check
      _
    $region15: #{tpu_custom_call.1} parent=1 // pred_check_branch
      %41 = sbr.rel (0) target = $region17
    $region16: #{tpu_custom_call.1} parent=1 // pred_region
      %s43 = ssub.s32 512, 512
      %44 = vsyncadd [#allocation6], %s43
      %s45 = sshll.u32 [#allocation7], 4
      %s46 = int_to_ptr.vmem [resolvable:$true] %s45
      %51 = dma.hbm_to_vmem [thread:$0]  %s3, 512, %s46, [#allocation6], 64, 64, 4
    $region17: #{tpu_custom_call.1} parent=1 // pred_fallthru
      _
    // Predicated region
    $region18: #{tpu_custom_call.1} parent=1 // pred_check
      _
    $region19: #{tpu_custom_call.1} parent=1 // pred_check_branch
      %53 = sbr.rel (0) target = $region21
    $region20: #{tpu_custom_call.1} parent=1 // pred_region
      _
    $region21: #{tpu_custom_call.1} parent=1 // pred_fallthru
      _
    // Predicated region
    $region22: #{tpu_custom_call.1} parent=1 // pred_check
      _
    $region23: #{tpu_custom_call.1} parent=1 // pred_check_branch
      %55 = sbr.rel (0) target = $region25
    $region24: #{tpu_custom_call.1} parent=1 // pred_region
      _
    $region25: #{tpu_custom_call.1} parent=1 // pred_fallthru
      _
    // Predicated region
    $region26: #{tpu_custom_call.1} parent=1 // pred_check
      _
    $region27: #{tpu_custom_call.1} parent=1 // pred_check_branch
      %57 = sbr.rel (0) target = $region29
    $region28: #{tpu_custom_call.1} parent=1 // pred_region
      _
    $region29: #{tpu_custom_call.1} parent=1 // pred_fallthru
      _
    // Predicated region
    $region30: #{tpu_custom_call.1} parent=1 // pred_check
      _
    $region31: #{tpu_custom_call.1} parent=1 // pred_check_branch
      %59 = sbr.rel (0) target = $region33
    $region32: #{tpu_custom_call.1} parent=1 // pred_region
      %60 = dma.done [#allocation4], 128
    $region33: #{tpu_custom_call.1} parent=1 // pred_fallthru
      _
    // Predicated region
    $region34: #{tpu_custom_call.1} parent=1 // pred_check
      _
    $region35: #{tpu_custom_call.1} parent=1 // pred_check_branch
      %62 = sbr.rel (0) target = $region37
    $region36: #{tpu_custom_call.1} parent=1 // pred_region
      %63 = dma.done [#allocation6], 256
    $region37: #{tpu_custom_call.1} parent=1 // pred_fallthru
      _
    // Predicated region
    $region38: #{tpu_custom_call.1} parent=1 // pred_check
      _
    $region39: #{tpu_custom_call.1} parent=1 // pred_check_branch
      %65 = sbr.rel (0) target = $region41
    $region40: #{tpu_custom_call.1} parent=1 // pred_region
      %66 = dma.done [#allocation6], 512
    $region41: #{tpu_custom_call.1} parent=1 // pred_fallthru
      _
    %v68 = vld [vmem:[#allocation3] sm:$0xff]
    %v69 = vpack.c.bf16 %v68, %v68
    %v70 = vld [vmem:[#allocation5] sm:$0xf]
    %v71 = vld [vmem:[#allocation5 + $0x4] sm:$0xf]
    %v72 = vld [vmem:[#allocation5 + $0x8] sm:$0xf]
    %v73 = vld [vmem:[#allocation5 + $0xc] sm:$0xf]
    %v74 = vld [vmem:[%s2] sm:$0x1]
    %v76 = vlaneseq
    %v77 = vshrl.u32 %v76, 7
    %v78 = vsub.s32 0, %v77
    %v79 = vrot.slane %v74, %v78
    %v85 = vunpack.c.l.b16 %v70
    %v86 = vunpack.c.l.b16 %v71
    %v87 = vunpack.c.l.b16 %v72
    %v88 = vunpack.c.l.b16 %v73
    %v89 = vpack.c.b16 %v86, %v85
    %v90 = vpack.c.b16 %v88, %v87
    %vm93 = vcmask 261120
    %v95 = vsel %vm93, %v69, 0
    %97 = vmatprep.subr.bf16.mxu0 0
    %98 = vmatpush1.bf16.msra.mxu0 0
    %99 = vmatprep.subr.bf16.mxu0 0
    %100 = vmatpush1.bf16.msra.mxu0 0
    %101 = vmatprep.subr.bf16.mxu0 0
    %102 = vmatpush1.bf16.msra.mxu0 0
    %103 = vmatprep.subr.bf16.mxu0 0
    %104 = vmatpush1.bf16.msra.mxu0 0
    %105 = vmatprep.subr.bf16.mxu0 0
    %106 = vmatpush1.bf16.msra.mxu0 0
    %107 = vmatprep.subr.bf16.mxu0 0
    %108 = vmatpush1.bf16.msra.mxu0 0
    %109 = vmatprep.subr.bf16.mxu0 0
    %110 = vmatpush1.bf16.msra.mxu0 %v90
    %111 = vmatprep.subr.bf16.mxu0 0
    %112 = vmatpush1.bf16.msra.mxu0 %v89
    %113 = vmatprep.subr.bf16.mxu0 0
    %114 = vmatpush2.bf16.msra.mxu0 0
    %115 = vmatprep.subr.bf16.mxu0 0
    %116 = vmatpush2.bf16.msra.mxu0 0
    %117 = vmatprep.subr.bf16.mxu0 0
    %118 = vmatpush2.bf16.msra.mxu0 0
    %119 = vmatprep.subr.bf16.mxu0 0
    %120 = vmatpush2.bf16.msra.mxu0 0
    %121 = vmatprep.subr.bf16.mxu0 0
    %122 = vmatpush2.bf16.msra.mxu0 0
    %123 = vmatprep.subr.bf16.mxu0 0
    %124 = vmatpush2.bf16.msra.mxu0 0
    %125 = vmatprep.subr.bf16.mxu0 0
    %126 = vmatpush2.bf16.msra.mxu0 0
    %127 = vmatprep.subr.bf16.mxu0 0
    %128 = vmatpush2.bf16.msra.mxu0 0
    %129 = vmatprep.mubr.bf16.mxu0 0
    %130 = vmatmul.mubr.bf16.gmra.mxu0 %v95
    %v131 = vpop.f32.mrf.mxu0
    %v132 = vadd.f32 %v79, %v131
    %v133 = vpop.f32.mrf.mxu0
    %v134 = vpop.f32.mrf.mxu0
    %v135 = vpop.f32.mrf.mxu0
    %136 = vdwg.mxu0
    %v137 = vmax.f32 %v132, 0.0
    %v138 = vpack.c.bf16 %v137, %v137
    %v139 = vld [vmem:[#allocation7] sm:$0xf]
    %v140 = vld [vmem:[#allocation7 + $0x4] sm:$0xf]
    %v141 = vld [vmem:[#allocation7 + $0x8] sm:$0xf]
    %v142 = vld [vmem:[#allocation7 + $0xc] sm:$0xf]
    %v143 = vld [vmem:[#allocation7 + $0x10] sm:$0xf]
    %v144 = vld [vmem:[#allocation7 + $0x14] sm:$0xf]
    %v145 = vld [vmem:[#allocation7 + $0x18] sm:$0xf]
    %v146 = vld [vmem:[#allocation7 + $0x1c] sm:$0xf]
    %v147 = vld [vmem:[%s4] sm:$0x1]
    %v149 = vlaneseq
    %v150 = vshrl.u32 %v149, 7
    %v151 = vsub.s32 0, %v150
    %v152 = vrot.slane %v147, %v151
    %v162 = vunpack.c.l.b16 %v139
    %v163 = vunpack.c.l.b16 %v140
    %v164 = vunpack.c.l.b16 %v141
    %v165 = vunpack.c.l.b16 %v142
    %v166 = vunpack.c.l.b16 %v143
    %v167 = vunpack.c.l.b16 %v144
    %v168 = vunpack.c.l.b16 %v145
    %v169 = vunpack.c.l.b16 %v146
    %v170 = vpack.c.b16 %v163, %v162
    %v171 = vpack.c.b16 %v165, %v164
    %v172 = vpack.c.b16 %v167, %v166
    %v173 = vpack.c.b16 %v169, %v168
    %vm178 = vcmask 523264
    %v180 = vsel %vm178, %v138, 0
    %182 = vmatprep.subr.bf16.mxu0 0
    %183 = vmatpush1.bf16.msra.mxu0 0
    %184 = vmatprep.subr.bf16.mxu0 0
    %185 = vmatpush1.bf16.msra.mxu0 0
    %186 = vmatprep.subr.bf16.mxu0 0
    %187 = vmatpush1.bf16.msra.mxu0 0
    %188 = vmatprep.subr.bf16.mxu0 0
    %189 = vmatpush1.bf16.msra.mxu0 0
    %190 = vmatprep.subr.bf16.mxu0 0
    %191 = vmatpush1.bf16.msra.mxu0 %v173
    %192 = vmatprep.subr.bf16.mxu0 0
    %193 = vmatpush1.bf16.msra.mxu0 %v172
    %194 = vmatprep.subr.bf16.mxu0 0
    %195 = vmatpush1.bf16.msra.mxu0 %v171
    %196 = vmatprep.subr.bf16.mxu0 0
    %197 = vmatpush1.bf16.msra.mxu0 %v170
    %198 = vmatprep.subr.bf16.mxu0 0
    %199 = vmatpush2.bf16.msra.mxu0 0
    %200 = vmatprep.subr.bf16.mxu0 0
    %201 = vmatpush2.bf16.msra.mxu0 0
    %202 = vmatprep.subr.bf16.mxu0 0
    %203 = vmatpush2.bf16.msra.mxu0 0
    %204 = vmatprep.subr.bf16.mxu0 0
    %205 = vmatpush2.bf16.msra.mxu0 0
    %206 = vmatprep.subr.bf16.mxu0 0
    %207 = vmatpush2.bf16.msra.mxu0 0
    %208 = vmatprep.subr.bf16.mxu0 0
    %209 = vmatpush2.bf16.msra.mxu0 0
    %210 = vmatprep.subr.bf16.mxu0 0
    %211 = vmatpush2.bf16.msra.mxu0 0
    %212 = vmatprep.subr.bf16.mxu0 0
    %213 = vmatpush2.bf16.msra.mxu0 0
    %214 = vmatprep.mubr.bf16.mxu0 0
    %215 = vmatmul.mubr.bf16.gmra.mxu0 %v180
    %v216 = vpop.f32.mrf.mxu0
    %v217 = vadd.f32 %v152, %v216
    %v218 = vpop.f32.mrf.mxu0
    %v219 = vpop.f32.mrf.mxu0
    %v220 = vpop.f32.mrf.mxu0
    %221 = vdwg.mxu0
    %v222 = vmax.f32 %v217, 0.0
    %v223 = vld [vmem:[%s5] sm:$0x1]
    %v225 = vlaneseq
    %v226 = vshrl.u32 %v225, 7
    %v227 = vsub.s32 0, %v226
    %v228 = vrot.slane %v223, %v227
    %v230 = vmul.f32 %v222, %v228
    %v231 = vsel %vm178, %v230, 0.0
    %232 = vadd.xlane.f32.xlu0 %v231
    %v233 = vpop.xlane.xlu0 %232
    %v234 = vld [vmem:[#allocation2] sm:$0x1]
    %v236 = vlaneseq
    %v237 = vshrl.u32 %v236, 7
    %v238 = vsub.s32 0, %v237
    %v239 = vrot.slane %v234, %v238
    %v241 = vadd.f32 %v233, %v239
    %vm242 = vcmask 7168
    %243 = vst.msk [vmem:[%s7] sm:$0xff] %vm242, %v241
    // Predicated region
    $region42: #{tpu_custom_call.1} parent=1 // pred_check
      _
    $region43: #{tpu_custom_call.1} parent=1 // pred_check_branch
      %245 = sbr.rel (0) target = $region45
    $region44: #{tpu_custom_call.1} parent=1 // pred_region
      _
    $region45: #{tpu_custom_call.1} parent=1 // pred_fallthru
      _
    // Predicated region
    $region46: #{tpu_custom_call.1} parent=1 // pred_check
      _
    $region47: #{tpu_custom_call.1} parent=1 // pred_check_branch
      %247 = sbr.rel (0) target = $region49
    $region48: #{tpu_custom_call.1} parent=1 // pred_region
      _
    $region49: #{tpu_custom_call.1} parent=1 // pred_fallthru
      _
    %248 = vsyncpa [#allocation4], 1
    %249 = vsyncpa [#allocation6], 1

</llo_original>
